<compile_context>
chip_gen: v7x
topology: tpu7x:2x2x1
jax: 0.10.0
libtpu: 0.0.40
codegen_flags: <defaults>
</compile_context>

<pallas_src>
import functools

import jax
import jax.numpy as jnp
from jax import lax
from jax.experimental import pallas as pl
from jax.experimental.pallas import tpu as pltpu


_LANE = 128
_TILE_ROWS = 2048  # (2048,128) f32 block = 1 MiB/operand; 3 ops x 2 bufs ~ 6 MiB VMEM


# -----------------------------------------------------------------------------
# EMA parameter update (EMAModel.update) as a Pallas kernel
# -----------------------------------------------------------------------------
def ema_kernel(alpha_ref, ema_ref, param_ref, out_ref):
    a = alpha_ref[0]                                  # scalar read from SMEM
    e = ema_ref[...].astype(jnp.float32)
    p = param_ref[...].astype(jnp.float32)            # live params upcast in-kernel
    out_ref[...] = (a * e + (1.0 - a) * p).astype(out_ref.dtype)


def _blend_2d(alpha, ema2d, live2d, tile_rows):
    """Blend one lane-dense [R, C] slab (C is 128 except for tiny odd leaves)."""
    R, C = ema2d.shape
    rows_per_block = min(R, tile_rows)                # full leaf if it fits one block
    grid = (pl.cdiv(R, rows_per_block),)              # partial last block is masked
    return pl.pallas_call(
        ema_kernel,
        out_shape=jax.ShapeDtypeStruct((R, C), ema2d.dtype),
        grid=grid,
        in_specs=[
            pl.BlockSpec(memory_space=pltpu.MemorySpace.SMEM),     # alpha scalar
            pl.BlockSpec((rows_per_block, C), lambda i: (i, 0)),   # ema leaf
            pl.BlockSpec((rows_per_block, C), lambda i: (i, 0)),   # live leaf
        ],
        out_specs=pl.BlockSpec((rows_per_block, C), lambda i: (i, 0)),
        input_output_aliases={1: 0},                  # ema leaf updated in place
        compiler_params=pltpu.CompilerParams(
            dimension_semantics=("parallel",)),       # lets v7x shard big leaves on 2 TCs
    )(alpha, ema2d, live2d)


def _blend_leaf(alpha, ema_leaf, live_leaf, tile_rows):
    """Blend one parameter leaf of arbitrary shape (incl. scalars)."""
    shape = ema_leaf.shape
    size = int(ema_leaf.size)
    if size >= _LANE and size % _LANE == 0:
        # zero-copy reshape to a lane-dense [size/128, 128] view
        rows = size // _LANE
        out2d = _blend_2d(alpha,
                          ema_leaf.reshape(rows, _LANE),
                          live_leaf.reshape(rows, _LANE),
                          tile_rows)
        return out2d.reshape(shape)
    # tiny / odd-sized leaf (biases, scalar params): pad to one lane width
    pad = (-size) % _LANE
    e2d = jnp.pad(ema_leaf.reshape(-1), (0, pad)).reshape(-1, _LANE)
    p2d = jnp.pad(live_leaf.reshape(-1), (0, pad)).reshape(-1, _LANE)
    out2d = _blend_2d(alpha, e2d, p2d, tile_rows)
    return out2d.reshape(-1)[:size].reshape(shape)


# Whole update path (per-leaf Pallas blends) as one jitted fn.  alpha is a
# traced (1,) array so different iterations do not recompile; the EMA pytree
# is donated so the in-place aliases in pallas_call are honored.
@functools.partial(jax.jit, donate_argnums=(0,), static_argnames=("tile_rows",))
def _ema_update_jit(ema_params, live_params, alpha, *, tile_rows):
    return jax.tree_util.tree_map(
        lambda e, p: _blend_leaf(alpha, e, p, tile_rows), ema_params, live_params)


# -----------------------------------------------------------------------------
# Inner model forward (the `self.model(x)` of EMAModel.forward) as a Pallas kernel
# -----------------------------------------------------------------------------
def mlp_forward_kernel(gain_ref, x_ref, w1_ref, b1_ref, w2_ref, b2_ref, o_ref):
    g = gain_ref[0]                                   # scalar param from SMEM
    x = x_ref[...]
    h = jnp.dot(x, w1_ref[...], preferred_element_type=jnp.float32,
                precision=lax.Precision.HIGHEST) + b1_ref[...]
    h = jnp.maximum(h, 0.0)
    y = jnp.dot(h, w2_ref[...], preferred_element_type=jnp.float32,
                precision=lax.Precision.HIGHEST) + b2_ref[...]
    o_ref[...] = (y * g).astype(o_ref.dtype)


@jax.jit
def mlp_forward(x, params):
    w1, b1, w2, b2 = params["w1"], params["b1"], params["w2"], params["b2"]
    gain = params["gain"].reshape(1).astype(jnp.float32)
    B, Din = x.shape
    H = w1.shape[1]
    Dout = w2.shape[1]
    return pl.pallas_call(
        mlp_forward_kernel,
        out_shape=jax.ShapeDtypeStruct((B, Dout), x.dtype),
        grid=(1,),
        in_specs=[
            pl.BlockSpec(memory_space=pltpu.MemorySpace.SMEM),  # gain scalar
            pl.BlockSpec((B, Din), lambda i: (0, 0)),
            pl.BlockSpec((Din, H), lambda i: (0, 0)),
            pl.BlockSpec((1, H), lambda i: (0, 0)),
            pl.BlockSpec((H, Dout), lambda i: (0, 0)),
            pl.BlockSpec((1, Dout), lambda i: (0, 0)),
        ],
        out_specs=pl.BlockSpec((B, Dout), lambda i: (0, 0)),
    )(gain, x, w1, b1.reshape(1, H), w2, b2.reshape(1, Dout))


# -----------------------------------------------------------------------------
# EMAModel equivalent
# -----------------------------------------------------------------------------
class EMAModelJAX:
    def __init__(self, model_params, alpha: float = 0.999, tile_rows: int = _TILE_ROWS):
        self.alpha = float(alpha)
        self.tile_rows = int(tile_rows)
        # EMA state kept as a per-leaf pytree (own copies, same dtypes/shapes),
        # like the PyTorch module keeps self.model.
        self.ema_params = jax.tree_util.tree_map(jnp.copy, model_params)
        leaves, treedef = jax.tree_util.tree_flatten(model_params)
        self._treedef = treedef
        self._shapes = tuple(l.shape for l in leaves)

    def _check_tree(self, model_params):
        leaves, treedef = jax.tree_util.tree_flatten(model_params)
        if treedef != self._treedef or tuple(l.shape for l in leaves) != self._shapes:
            raise ValueError("update(): model param tree/shape mismatch vs EMA state")

    def update(self, iteration: int, model_params):
        self._check_tree(model_params)
        if iteration > 1:
            alpha = min(1.0 - 1.0 / (iteration - 1), self.alpha)
        else:
            alpha = 0.0
        alpha_arr = jnp.asarray([alpha], dtype=jnp.float32)
        self.ema_params = _ema_update_jit(
            self.ema_params, model_params, alpha_arr, tile_rows=self.tile_rows)

    @property
    def params(self):
        return self.ema_params

    def forward(self, x):
        return mlp_forward(x, self.ema_params)

    __call__ = forward


# -----------------------------------------------------------------------------
# Main
# -----------------------------------------------------------------------------
def _init_inner_model_params(key, d_in=128, d_hidden=256, d_out=128):
    k1, k2, k3, k4 = jax.random.split(key, 4)
    return {
        "w1": jax.random.normal(k1, (d_in, d_hidden), jnp.float32) * 0.05,
        "b1": jax.random.normal(k2, (d_hidden,), jnp.float32) * 0.01,
        "w2": jax.random.normal(k3, (d_hidden, d_out), jnp.float32) * 0.05,
        "b2": jax.random.normal(k4, (d_out,), jnp.float32) * 0.01,
        "gain": jnp.asarray(1.0, jnp.float32),   # scalar param (PyTorch scalar branch)
    }


def _ref_forward(x, p):
    h = jnp.maximum(
        jnp.dot(x, p["w1"], precision=lax.Precision.HIGHEST) + p["b1"], 0.0)
    y = jnp.dot(h, p["w2"], precision=lax.Precision.HIGHEST) + p["b2"]
    return y * p["gain"]


if __name__ == "__main__":
    key = jax.random.PRNGKey(0)
    k_model, k_live1, k_live2, k_x = jax.random.split(key, 4)

    # "self.model": inner model params held by the EMA wrapper.
    base_params = _init_inner_model_params(k_model)
    ema_model = EMAModelJAX(base_params, alpha=0.999)

    # Two distinct "live" model snapshots to exercise a real blend.
    def perturb(params, k, scale):
        ks = jax.random.split(k, len(params))
        return {name: p + scale * jax.random.normal(kk, p.shape, p.dtype)
                for (name, p), kk in zip(params.items(), ks)}

    live1 = perturb(base_params, k_live1, 0.10)
    live2 = perturb(base_params, k_live2, 0.30)

    # update(1): alpha = 0  -> ema == live1
    ema_model.update(1, live1)
    # update(5): alpha = min(1 - 1/4, 0.999) = 0.75 -> ema = 0.75*live1 + 0.25*live2
    ema_model.update(5, live2)

    # Forward pass through the (EMA) model.
    x = jax.random.normal(k_x, (8, 128), jnp.float32)
    y = ema_model(x)
    y = jax.block_until_ready(y)

    # Reference checks (plain JAX) that verify the alpha blend per leaf.
    ref_params = jax.tree_util.tree_map(lambda e, p: 0.75 * e + 0.25 * p, live1, live2)
    ema_params = ema_model.params
    for name in base_params:
        assert ema_params[name].dtype == base_params[name].dtype, f"dtype changed: {name}"
        assert ema_params[name].shape == base_params[name].shape, f"shape changed: {name}"
        assert jnp.allclose(ema_params[name], ref_params[name],
                            atol=1e-5, rtol=1e-5), f"ema param mismatch: {name}"

    y_ref = _ref_forward(x, ref_params)
    assert jnp.allclose(y, y_ref, atol=1e-4, rtol=1e-4), "forward mismatch"

    print("KERNEL_OK")
</pallas_src>

<mosaic_0001>
module attributes {stable_mosaic.version = 11 : i64} {
  func.func @ema_kernel(%arg0: i32, %arg1: memref<1xf32, #tpu.memory_space<smem>>, %arg2: memref<1x128xf32, #tpu.memory_space<vmem>>, %arg3: memref<1x128xf32, #tpu.memory_space<vmem>>, %arg4: memref<1x128xf32, #tpu.memory_space<vmem>>) attributes {dimension_semantics = [#tpu.dimension_semantics<parallel>], iteration_bounds = array<i64: 1>, scalar_prefetch = 0 : i64, scratch_operands = 0 : i64, tpu.core_type = #tpu.core_type<tc>, window_params = [{transform_indices = @transform_0, window_bounds = array<i64: 1>}, {transform_indices = @transform_1, window_bounds = array<i64: 1, 128>}, {transform_indices = @transform_2, window_bounds = array<i64: 1, 128>}, {transform_indices = @transform_3, window_bounds = array<i64: 1, 128>}]} {
    %c0 = arith.constant 0 : index
    %0 = memref.load %arg1[%c0] : memref<1xf32, #tpu.memory_space<smem>>
    %c0_0 = arith.constant 0 : index
    %c0_1 = arith.constant 0 : index
    %1 = vector.load %arg2[%c0_0, %c0_1] : memref<1x128xf32, #tpu.memory_space<vmem>>, vector<1x128xf32>
    %c0_2 = arith.constant 0 : index
    %c0_3 = arith.constant 0 : index
    %2 = vector.load %arg3[%c0_2, %c0_3] : memref<1x128xf32, #tpu.memory_space<vmem>>, vector<1x128xf32>
    %3 = vector.broadcast %0 : f32 to vector<1x128xf32>
    %4 = arith.mulf %3, %1 : vector<1x128xf32>
    %cst = arith.constant 1.000000e+00 : f32
    %5 = arith.subf %cst, %0 : f32
    %6 = vector.broadcast %5 : f32 to vector<1x128xf32>
    %7 = arith.mulf %6, %2 : vector<1x128xf32>
    %8 = arith.addf %4, %7 : vector<1x128xf32>
    %c0_4 = arith.constant 0 : index
    %c0_5 = arith.constant 0 : index
    %9 = vector.load %arg4[%c0_4, %c0_5] : memref<1x128xf32, #tpu.memory_space<vmem>>, vector<1x128xf32>
    tpu.vector_store %arg4[%c0_4, %c0_5], %8 {strides = array<i32>} : memref<1x128xf32, #tpu.memory_space<vmem>>, vector<1x128xf32>,
    return
  }
  func.func @transform_0(%arg0: i32) -> i32 {
    %c0_i32 = arith.constant 0 : i32
    %c0_i32_0 = arith.constant 0 : i32
    return %c0_i32 : i32
  }
  func.func @transform_1(%arg0: i32) -> (i32, i32) {
    %c0_i32 = arith.constant 0 : i32
    %c0_i32_0 = arith.constant 0 : i32
    return %arg0, %c0_i32 : i32, i32
  }
  func.func @transform_2(%arg0: i32) -> (i32, i32) {
    %c0_i32 = arith.constant 0 : i32
    %c0_i32_0 = arith.constant 0 : i32
    return %arg0, %c0_i32 : i32, i32
  }
  func.func @transform_3(%arg0: i32) -> (i32, i32) {
    %c0_i32 = arith.constant 0 : i32
    %c0_i32_0 = arith.constant 0 : i32
    return %arg0, %c0_i32 : i32, i32
  }
}

module attributes {stable_mosaic.version = 11 : i64} {
  func.func @ema_kernel(%arg0: i32, %arg1: memref<1xf32, #tpu.memory_space<smem>>, %arg2: memref<2x128xf32, #tpu.memory_space<vmem>>, %arg3: memref<2x128xf32, #tpu.memory_space<vmem>>, %arg4: memref<2x128xf32, #tpu.memory_space<vmem>>) attributes {dimension_semantics = [#tpu.dimension_semantics<parallel>], iteration_bounds = array<i64: 1>, scalar_prefetch = 0 : i64, scratch_operands = 0 : i64, tpu.core_type = #tpu.core_type<tc>, window_params = [{transform_indices = @transform_0, window_bounds = array<i64: 1>}, {transform_indices = @transform_1, window_bounds = array<i64: 2, 128>}, {transform_indices = @transform_2, window_bounds = array<i64: 2, 128>}, {transform_indices = @transform_3, window_bounds = array<i64: 2, 128>}]} {
    %c0 = arith.constant 0 : index
    %0 = memref.load %arg1[%c0] : memref<1xf32, #tpu.memory_space<smem>>
    %c0_0 = arith.constant 0 : index
    %c0_1 = arith.constant 0 : index
    %1 = vector.load %arg2[%c0_0, %c0_1] : memref<2x128xf32, #tpu.memory_space<vmem>>, vector<2x128xf32>
    %c0_2 = arith.constant 0 : index
    %c0_3 = arith.constant 0 : index
    %2 = vector.load %arg3[%c0_2, %c0_3] : memref<2x128xf32, #tpu.memory_space<vmem>>, vector<2x128xf32>
    %3 = vector.broadcast %0 : f32 to vector<2x128xf32>
    %4 = arith.mulf %3, %1 : vector<2x128xf32>
    %cst = arith.constant 1.000000e+00 : f32
    %5 = arith.subf %cst, %0 : f32
    %6 = vector.broadcast %5 : f32 to vector<2x128xf32>
    %7 = arith.mulf %6, %2 : vector<2x128xf32>
    %8 = arith.addf %4, %7 : vector<2x128xf32>
    %c0_4 = arith.constant 0 : index
    %c0_5 = arith.constant 0 : index
    %9 = vector.load %arg4[%c0_4, %c0_5] : memref<2x128xf32, #tpu.memory_space<vmem>>, vector<2x128xf32>
    tpu.vector_store %arg4[%c0_4, %c0_5], %8 {strides = array<i32>} : memref<2x128xf32, #tpu.memory_space<vmem>>, vector<2x128xf32>,
    return
  }
  func.func @transform_0(%arg0: i32) -> i32 {
    %c0_i32 = arith.constant 0 : i32
    %c0_i32_0 = arith.constant 0 : i32
    return %c0_i32 : i32
  }
  func.func @transform_1(%arg0: i32) -> (i32, i32) {
    %c0_i32 = arith.constant 0 : i32
    %c0_i32_0 = arith.constant 0 : i32
    return %arg0, %c0_i32 : i32, i32
  }
  func.func @transform_2(%arg0: i32) -> (i32, i32) {
    %c0_i32 = arith.constant 0 : i32
    %c0_i32_0 = arith.constant 0 : i32
    return %arg0, %c0_i32 : i32, i32
  }
  func.func @transform_3(%arg0: i32) -> (i32, i32) {
    %c0_i32 = arith.constant 0 : i32
    %c0_i32_0 = arith.constant 0 : i32
    return %arg0, %c0_i32 : i32, i32
  }
}

module attributes {stable_mosaic.version = 11 : i64} {
  func.func @ema_kernel(%arg0: i32, %arg1: memref<1xf32, #tpu.memory_space<smem>>, %arg2: memref<1x128xf32, #tpu.memory_space<vmem>>, %arg3: memref<1x128xf32, #tpu.memory_space<vmem>>, %arg4: memref<1x128xf32, #tpu.memory_space<vmem>>) attributes {dimension_semantics = [#tpu.dimension_semantics<parallel>], iteration_bounds = array<i64: 1>, scalar_prefetch = 0 : i64, scratch_operands = 0 : i64, tpu.core_type = #tpu.core_type<tc>, window_params = [{transform_indices = @transform_0, window_bounds = array<i64: 1>}, {transform_indices = @transform_1, window_bounds = array<i64: 1, 128>}, {transform_indices = @transform_2, window_bounds = array<i64: 1, 128>}, {transform_indices = @transform_3, window_bounds = array<i64: 1, 128>}]} {
    %c0 = arith.constant 0 : index
    %0 = memref.load %arg1[%c0] : memref<1xf32, #tpu.memory_space<smem>>
    %c0_0 = arith.constant 0 : index
    %c0_1 = arith.constant 0 : index
    %1 = vector.load %arg2[%c0_0, %c0_1] : memref<1x128xf32, #tpu.memory_space<vmem>>, vector<1x128xf32>
    %c0_2 = arith.constant 0 : index
    %c0_3 = arith.constant 0 : index
    %2 = vector.load %arg3[%c0_2, %c0_3] : memref<1x128xf32, #tpu.memory_space<vmem>>, vector<1x128xf32>
    %3 = vector.broadcast %0 : f32 to vector<1x128xf32>
    %4 = arith.mulf %3, %1 : vector<1x128xf32>
    %cst = arith.constant 1.000000e+00 : f32
    %5 = arith.subf %cst, %0 : f32
    %6 = vector.broadcast %5 : f32 to vector<1x128xf32>
    %7 = arith.mulf %6, %2 : vector<1x128xf32>
    %8 = arith.addf %4, %7 : vector<1x128xf32>
    %c0_4 = arith.constant 0 : index
    %c0_5 = arith.constant 0 : index
    %9 = vector.load %arg4[%c0_4, %c0_5] : memref<1x128xf32, #tpu.memory_space<vmem>>, vector<1x128xf32>
    tpu.vector_store %arg4[%c0_4, %c0_5], %8 {strides = array<i32>} : memref<1x128xf32, #tpu.memory_space<vmem>>, vector<1x128xf32>,
    return
  }
  func.func @transform_0(%arg0: i32) -> i32 {
    %c0_i32 = arith.constant 0 : i32
    %c0_i32_0 = arith.constant 0 : i32
    return %c0_i32 : i32
  }
  func.func @transform_1(%arg0: i32) -> (i32, i32) {
    %c0_i32 = arith.constant 0 : i32
    %c0_i32_0 = arith.constant 0 : i32
    return %arg0, %c0_i32 : i32, i32
  }
  func.func @transform_2(%arg0: i32) -> (i32, i32) {
    %c0_i32 = arith.constant 0 : i32
    %c0_i32_0 = arith.constant 0 : i32
    return %arg0, %c0_i32 : i32, i32
  }
  func.func @transform_3(%arg0: i32) -> (i32, i32) {
    %c0_i32 = arith.constant 0 : i32
    %c0_i32_0 = arith.constant 0 : i32
    return %arg0, %c0_i32 : i32, i32
  }
}

module attributes {stable_mosaic.version = 11 : i64} {
  func.func @ema_kernel(%arg0: i32, %arg1: memref<1xf32, #tpu.memory_space<smem>>, %arg2: memref<256x128xf32, #tpu.memory_space<vmem>>, %arg3: memref<256x128xf32, #tpu.memory_space<vmem>>, %arg4: memref<256x128xf32, #tpu.memory_space<vmem>>) attributes {dimension_semantics = [#tpu.dimension_semantics<parallel>], iteration_bounds = array<i64: 1>, scalar_prefetch = 0 : i64, scratch_operands = 0 : i64, tpu.core_type = #tpu.core_type<tc>, window_params = [{transform_indices = @transform_0, window_bounds = array<i64: 1>}, {transform_indices = @transform_1, window_bounds = array<i64: 256, 128>}, {transform_indices = @transform_2, window_bounds = array<i64: 256, 128>}, {transform_indices = @transform_3, window_bounds = array<i64: 256, 128>}]} {
    %c0 = arith.constant 0 : index
    %0 = memref.load %arg1[%c0] : memref<1xf32, #tpu.memory_space<smem>>
    %c0_0 = arith.constant 0 : index
    %c0_1 = arith.constant 0 : index
    %1 = vector.load %arg2[%c0_0, %c0_1] : memref<256x128xf32, #tpu.memory_space<vmem>>, vector<256x128xf32>
    %c0_2 = arith.constant 0 : index
    %c0_3 = arith.constant 0 : index
    %2 = vector.load %arg3[%c0_2, %c0_3] : memref<256x128xf32, #tpu.memory_space<vmem>>, vector<256x128xf32>
    %3 = vector.broadcast %0 : f32 to vector<256x128xf32>
    %4 = arith.mulf %3, %1 : vector<256x128xf32>
    %cst = arith.constant 1.000000e+00 : f32
    %5 = arith.subf %cst, %0 : f32
    %6 = vector.broadcast %5 : f32 to vector<256x128xf32>
    %7 = arith.mulf %6, %2 : vector<256x128xf32>
    %8 = arith.addf %4, %7 : vector<256x128xf32>
    %c0_4 = arith.constant 0 : index
    %c0_5 = arith.constant 0 : index
    %9 = vector.load %arg4[%c0_4, %c0_5] : memref<256x128xf32, #tpu.memory_space<vmem>>, vector<256x128xf32>
    tpu.vector_store %arg4[%c0_4, %c0_5], %8 {strides = array<i32>} : memref<256x128xf32, #tpu.memory_space<vmem>>, vector<256x128xf32>,
    return
  }
  func.func @transform_0(%arg0: i32) -> i32 {
    %c0_i32 = arith.constant 0 : i32
    %c0_i32_0 = arith.constant 0 : i32
    return %c0_i32 : i32
  }
  func.func @transform_1(%arg0: i32) -> (i32, i32) {
    %c0_i32 = arith.constant 0 : i32
    %c0_i32_0 = arith.constant 0 : i32
    return %arg0, %c0_i32 : i32, i32
  }
  func.func @transform_2(%arg0: i32) -> (i32, i32) {
    %c0_i32 = arith.constant 0 : i32
    %c0_i32_0 = arith.constant 0 : i32
    return %arg0, %c0_i32 : i32, i32
  }
  func.func @transform_3(%arg0: i32) -> (i32, i32) {
    %c0_i32 = arith.constant 0 : i32
    %c0_i32_0 = arith.constant 0 : i32
    return %arg0, %c0_i32 : i32, i32
  }
}

</mosaic_0001>

<llo_original>
// kernel: _ema_update_jit.5
$region0: #{_ema_update_jit.5}
  #allocation0 [shape = 'u32[]', space=smem, size = 0x4, offset = 0x4, fixed_abs, tag = 'smem constant byte address 0x4 - core index']
  #allocation1 [shape = 'u32[144,128]{1,0:T(1,128)}', space=vmem, size = 0x12000, scoped, tag = 'internal scratch']
  #allocation2 [shape = 'f32[1]{0:T(128)S(6)}', space=smem, size = 0x200, scoped, tag = 'scoped memory for _ema_update_jit.5']
  %s0 = inlined_call_operand.<no memory space> [shape: f32[1], index: 0, kind: input, shape index: {}]
  %s1 = inlined_call_operand.vmem [shape: f32[2,128], index: 1, kind: input, shape index: {}, may-alias: {1,3}]
  %s2 = inlined_call_operand.vmem [shape: f32[2,128], index: 2, kind: input, shape index: {}]
  %s3 = inlined_call_operand.vmem [shape: f32[2,128], index: 3, kind: output, shape index: {}, may-alias: {1,3}]
  %s4 = sld [smem:[#allocation0]]
  $region22: #{_ema_update_jit.5} parent=0
    _
  %s6 = ssub.s32 1, %s4
  %s7 = scalar_select 0, %s6, %s4
  %8 = sst [smem:[#allocation2]] %s0
  // Predicated region
  $region2: #{_ema_update_jit.5} parent=0 // pred_check
    _
  $region3: #{_ema_update_jit.5} parent=0 // pred_check_branch
    %10 = sbr.rel (0) target = $region5
  $region4: #{_ema_update_jit.5} parent=0 // pred_region
    _
  $region5: #{_ema_update_jit.5} parent=0 // pred_fallthru
    _
  // Predicated region
  $region6: #{_ema_update_jit.5} parent=0 // pred_check
    _
  $region7: #{_ema_update_jit.5} parent=0 // pred_check_branch
    %12 = sbr.rel (0) target = $region9
  $region8: #{_ema_update_jit.5} parent=0 // pred_region
    _
  $region9: #{_ema_update_jit.5} parent=0 // pred_fallthru
    _
  // Predicated region
  $region10: #{_ema_update_jit.5} parent=0 // pred_check
    _
  $region11: #{_ema_update_jit.5} parent=0 // pred_check_branch
    %14 = sbr.rel (0) target = $region13
  $region12: #{_ema_update_jit.5} parent=0 // pred_region
    _
  $region13: #{_ema_update_jit.5} parent=0 // pred_fallthru
    _
  %s15 = sld [smem:[#allocation2]]
  %v16 = vld [vmem:[%s1] sm:$0x3]
  %v17 = vld [vmem:[%s2] sm:$0x3]
  %v18 = vstv %s15
  %v19 = vmul.f32 %v18, %v16
  %s20 = ssub.f32 1.0, %s15
  %v21 = vstv %s20
  %v22 = vmul.f32 %v21, %v17
  %v23 = vadd.f32 %v19, %v22
  %24 = vst [vmem:[%s3] sm:$0x3] %v23
  // Predicated region
  $region14: #{_ema_update_jit.5} parent=0 // pred_check
    _
  $region15: #{_ema_update_jit.5} parent=0 // pred_check_branch
    %26 = sbr.rel (0) target = $region17
  $region16: #{_ema_update_jit.5} parent=0 // pred_region
    _
  $region17: #{_ema_update_jit.5} parent=0 // pred_fallthru
    _
  // Predicated region
  $region18: #{_ema_update_jit.5} parent=0 // pred_check
    _
  $region19: #{_ema_update_jit.5} parent=0 // pred_check_branch
    %28 = sbr.rel (0) target = $region21
  $region20: #{_ema_update_jit.5} parent=0 // pred_region
    _
  $region21: #{_ema_update_jit.5} parent=0 // pred_fallthru
    _

// kernel: _ema_update_jit.6
$region0: #{_ema_update_jit.6}
  #allocation0 [shape = 'u32[]', space=smem, size = 0x4, offset = 0x4, fixed_abs, tag = 'smem constant byte address 0x4 - core index']
  #allocation1 [shape = 'u32[144,128]{1,0:T(1,128)}', space=vmem, size = 0x12000, scoped, tag = 'internal scratch']
  #allocation2 [shape = 'f32[1]{0:T(128)S(6)}', space=smem, size = 0x200, scoped, tag = 'scoped memory for _ema_update_jit.6']
  %s0 = inlined_call_operand.<no memory space> [shape: f32[1], index: 0, kind: input, shape index: {}]
  %s1 = inlined_call_operand.vmem [shape: f32[1,128], index: 1, kind: input, shape index: {}, may-alias: {1,3}]
  %s2 = inlined_call_operand.vmem [shape: f32[1,128], index: 2, kind: input, shape index: {}]
  %s3 = inlined_call_operand.vmem [shape: f32[1,128], index: 3, kind: output, shape index: {}, may-alias: {1,3}]
  %s4 = sld [smem:[#allocation0]]
  $region22: #{_ema_update_jit.6} parent=0
    _
  %s6 = ssub.s32 1, %s4
  %s7 = scalar_select 0, %s6, %s4
  %8 = sst [smem:[#allocation2]] %s0
  // Predicated region
  $region2: #{_ema_update_jit.6} parent=0 // pred_check
    _
  $region3: #{_ema_update_jit.6} parent=0 // pred_check_branch
    %10 = sbr.rel (0) target = $region5
  $region4: #{_ema_update_jit.6} parent=0 // pred_region
    _
  $region5: #{_ema_update_jit.6} parent=0 // pred_fallthru
    _
  // Predicated region
  $region6: #{_ema_update_jit.6} parent=0 // pred_check
    _
  $region7: #{_ema_update_jit.6} parent=0 // pred_check_branch
    %12 = sbr.rel (0) target = $region9
  $region8: #{_ema_update_jit.6} parent=0 // pred_region
    _
  $region9: #{_ema_update_jit.6} parent=0 // pred_fallthru
    _
  // Predicated region
  $region10: #{_ema_update_jit.6} parent=0 // pred_check
    _
  $region11: #{_ema_update_jit.6} parent=0 // pred_check_branch
    %14 = sbr.rel (0) target = $region13
  $region12: #{_ema_update_jit.6} parent=0 // pred_region
    _
  $region13: #{_ema_update_jit.6} parent=0 // pred_fallthru
    _
  %s15 = sld [smem:[#allocation2]]
  %v16 = vld [vmem:[%s1] sm:$0x1]
  %v17 = vld [vmem:[%s2] sm:$0x1]
  %v18 = vstv %s15
  %v19 = vmul.f32 %v18, %v16
  %s20 = ssub.f32 1.0, %s15
  %v21 = vstv %s20
  %v22 = vmul.f32 %v21, %v17
  %v23 = vadd.f32 %v19, %v22
  %24 = vst [vmem:[%s3] sm:$0x1] %v23
  // Predicated region
  $region14: #{_ema_update_jit.6} parent=0 // pred_check
    _
  $region15: #{_ema_update_jit.6} parent=0 // pred_check_branch
    %26 = sbr.rel (0) target = $region17
  $region16: #{_ema_update_jit.6} parent=0 // pred_region
    _
  $region17: #{_ema_update_jit.6} parent=0 // pred_fallthru
    _
  // Predicated region
  $region18: #{_ema_update_jit.6} parent=0 // pred_check
    _
  $region19: #{_ema_update_jit.6} parent=0 // pred_check_branch
    %28 = sbr.rel (0) target = $region21
  $region20: #{_ema_update_jit.6} parent=0 // pred_region
    _
  $region21: #{_ema_update_jit.6} parent=0 // pred_fallthru
    _

// kernel: _ema_update_jit.7
$region0: #{_ema_update_jit.7}
  #allocation0 [shape = 'u32[]', space=smem, size = 0x4, offset = 0x4, fixed_abs, tag = 'smem constant byte address 0x4 - core index']
  #allocation1 [shape = 'u32[144,128]{1,0:T(1,128)}', space=vmem, size = 0x12000, scoped, tag = 'internal scratch']
  #allocation2 [shape = 'f32[1]{0:T(128)S(6)}', space=smem, size = 0x200, scoped, tag = 'scoped memory for _ema_update_jit.7']
  %s0 = inlined_call_operand.<no memory space> [shape: f32[1], index: 0, kind: input, shape index: {}]
  %s1 = inlined_call_operand.hbm [shape: f32[1,128], index: 1, kind: input, shape index: {}, may-alias: {1,3}]
  %s2 = inlined_call_operand.vmem [shape: f32[1,128], index: 2, kind: input, shape index: {}]
  %s3 = inlined_call_operand.hbm [shape: f32[1,128], index: 3, kind: output, shape index: {}, may-alias: {1,3}]
  %s4 = sld [smem:[#allocation0]]
  $region26: #{_ema_update_jit.7} parent=0
    _
  %s6 = ssub.s32 1, %s4
  %s7 = scalar_select 0, %s6, %s4
  %8 = sst [smem:[#allocation2]] %s0
  $region1: #{_ema_update_jit.7} parent=0
    #allocation3 [shape = 'u8[512]{0}', space=vmem, size = 0x400, scoped, tag = 'input window, operand 1, single buffered']
    #allocation4 [shape = 's32[1]{0}', space=sflag, size = 0x4, scoped, tag = 'scoped memory for _ema_update_jit.7']
    #allocation5 [shape = 's32[1]{0}', space=sflag, size = 0x4, scoped, tag = 'scoped memory for _ema_update_jit.7']
    #allocation6 [shape = 'u8[512]{0}', space=vmem, size = 0x400, scoped, tag = 'output window, operand 0, single buffered']
    %9 = vsyncpa [#allocation4], 0
    %10 = vsyncpa [#allocation5], 0
    // Predicated region
    $region2: #{_ema_update_jit.7} parent=1 // pred_check
      _
    $region3: #{_ema_update_jit.7} parent=1 // pred_check_branch
      %12 = sbr.rel (0) target = $region5
    $region4: #{_ema_update_jit.7} parent=1 // pred_region
      _
    $region5: #{_ema_update_jit.7} parent=1 // pred_fallthru
      _
    // Predicated region
    $region6: #{_ema_update_jit.7} parent=1 // pred_check
      _
    $region7: #{_ema_update_jit.7} parent=1 // pred_check_branch
      %14 = sbr.rel (0) target = $region9
    $region8: #{_ema_update_jit.7} parent=1 // pred_region
      %s16 = ssub.s32 16, 16
      %17 = vsyncadd [#allocation4], %s16
      %s19 = sshll.u32 [#allocation3], 4
      %s20 = int_to_ptr.vmem [resolvable:$true] %s19
      %22 = dma.hbm_to_vmem [thread:$0]  %s1, 16, %s20, [#allocation4]
    $region9: #{_ema_update_jit.7} parent=1 // pred_fallthru
      _
    // Predicated region
    $region10: #{_ema_update_jit.7} parent=1 // pred_check
      _
    $region11: #{_ema_update_jit.7} parent=1 // pred_check_branch
      %24 = sbr.rel (0) target = $region13
    $region12: #{_ema_update_jit.7} parent=1 // pred_region
      _
    $region13: #{_ema_update_jit.7} parent=1 // pred_fallthru
      _
    // Predicated region
    $region14: #{_ema_update_jit.7} parent=1 // pred_check
      _
    $region15: #{_ema_update_jit.7} parent=1 // pred_check_branch
      %26 = sbr.rel (0) target = $region17
    $region16: #{_ema_update_jit.7} parent=1 // pred_region
      %27 = dma.done [#allocation4], 16
    $region17: #{_ema_update_jit.7} parent=1 // pred_fallthru
      _
    %s28 = sld [smem:[#allocation2]]
    %v29 = vld [vmem:[#allocation3] sm:$0x1]
    %v30 = vld [vmem:[%s2] sm:$0x1]
    %v31 = vstv %s28
    %v32 = vmul.f32 %v31, %v29
    %s33 = ssub.f32 1.0, %s28
    %v34 = vstv %s33
    %v35 = vmul.f32 %v34, %v30
    %v36 = vadd.f32 %v32, %v35
    %37 = vst [vmem:[#allocation6] sm:$0x1] %v36
    // Predicated region
    $region18: #{_ema_update_jit.7} parent=1 // pred_check
      _
    $region19: #{_ema_update_jit.7} parent=1 // pred_check_branch
      %39 = sbr.rel (0) target = $region21
    $region20: #{_ema_update_jit.7} parent=1 // pred_region
      %s41 = ssub.s32 16, 16
      %42 = vsyncadd [#allocation5], %s41
      %s44 = sshll.u32 [#allocation6], 4
      %s45 = int_to_ptr.vmem [resolvable:$true] %s44
      %47 = dma.vmem_to_hbm [thread:$0]  %s45, 16, %s3, [#allocation5]
    $region21: #{_ema_update_jit.7} parent=1 // pred_fallthru
      _
    // Predicated region
    $region22: #{_ema_update_jit.7} parent=1 // pred_check
      _
    $region23: #{_ema_update_jit.7} parent=1 // pred_check_branch
      %49 = sbr.rel (0) target = $region25
    $region24: #{_ema_update_jit.7} parent=1 // pred_region
      %50 = dma.done [#allocation5], 16
    $region25: #{_ema_update_jit.7} parent=1 // pred_fallthru
      _
    %51 = vsyncpa [#allocation4], 1
    %52 = vsyncpa [#allocation5], 1

// kernel: _ema_update_jit.9
$region0: #{_ema_update_jit.9}
  #allocation0 [shape = 'u32[]', space=smem, size = 0x4, offset = 0x4, fixed_abs, tag = 'smem constant byte address 0x4 - core index']
  #allocation1 [shape = 'u32[144,128]{1,0:T(1,128)}', space=vmem, size = 0x12000, scoped, tag = 'internal scratch']
  #allocation2 [shape = 'f32[1]{0:T(128)S(6)}', space=smem, size = 0x200, scoped, tag = 'scoped memory for _ema_update_jit.9']
  %s0 = inlined_call_operand.<no memory space> [shape: f32[1], index: 0, kind: input, shape index: {}]
  %s1 = inlined_call_operand.vmem [shape: f32[256,128], index: 1, kind: input, shape index: {}, may-alias: {1,3}]
  %s2 = inlined_call_operand.vmem [shape: f32[256,128], index: 2, kind: input, shape index: {}]
  %s3 = inlined_call_operand.vmem [shape: f32[256,128], index: 3, kind: output, shape index: {}, may-alias: {1,3}]
  %s4 = sld [smem:[#allocation0]]
  $region22: #{_ema_update_jit.9} parent=0
    _
  %s6 = ssub.s32 1, %s4
  %s7 = scalar_select 0, %s6, %s4
  %8 = sst [smem:[#allocation2]] %s0
  // Predicated region
  $region2: #{_ema_update_jit.9} parent=0 // pred_check
    _
  $region3: #{_ema_update_jit.9} parent=0 // pred_check_branch
    %10 = sbr.rel (0) target = $region5
  $region4: #{_ema_update_jit.9} parent=0 // pred_region
    _
  $region5: #{_ema_update_jit.9} parent=0 // pred_fallthru
    _
  // Predicated region
  $region6: #{_ema_update_jit.9} parent=0 // pred_check
    _
  $region7: #{_ema_update_jit.9} parent=0 // pred_check_branch
    %12 = sbr.rel (0) target = $region9
  $region8: #{_ema_update_jit.9} parent=0 // pred_region
    _
  $region9: #{_ema_update_jit.9} parent=0 // pred_fallthru
    _
  // Predicated region
  $region10: #{_ema_update_jit.9} parent=0 // pred_check
    _
  $region11: #{_ema_update_jit.9} parent=0 // pred_check_branch
    %14 = sbr.rel (0) target = $region13
  $region12: #{_ema_update_jit.9} parent=0 // pred_region
    _
  $region13: #{_ema_update_jit.9} parent=0 // pred_fallthru
    _
  %s15 = sld [smem:[#allocation2]]
  %v16 = vld [vmem:[%s1] sm:$0xff]
  %v17 = vld [vmem:[%s1 + $0x8] sm:$0xff]
  %v18 = vld [vmem:[%s1 + $0x10] sm:$0xff]
  %v19 = vld [vmem:[%s1 + $0x18] sm:$0xff]
  %v20 = vld [vmem:[%s1 + $0x20] sm:$0xff]
  %v21 = vld [vmem:[%s1 + $0x28] sm:$0xff]
  %v22 = vld [vmem:[%s1 + $0x30] sm:$0xff]
  %v23 = vld [vmem:[%s1 + $0x38] sm:$0xff]
  %v24 = vld [vmem:[%s1 + $0x40] sm:$0xff]
  %v25 = vld [vmem:[%s1 + $0x48] sm:$0xff]
  %v26 = vld [vmem:[%s1 + $0x50] sm:$0xff]
  %v27 = vld [vmem:[%s1 + $0x58] sm:$0xff]
  %v28 = vld [vmem:[%s1 + $0x60] sm:$0xff]
  %v29 = vld [vmem:[%s1 + $0x68] sm:$0xff]
  %v30 = vld [vmem:[%s1 + $0x70] sm:$0xff]
  %v31 = vld [vmem:[%s1 + $0x78] sm:$0xff]
  %v32 = vld [vmem:[%s1 + $0x80] sm:$0xff]
  %v33 = vld [vmem:[%s1 + $0x88] sm:$0xff]
  %v34 = vld [vmem:[%s1 + $0x90] sm:$0xff]
  %v35 = vld [vmem:[%s1 + $0x98] sm:$0xff]
  %v36 = vld [vmem:[%s1 + $0xa0] sm:$0xff]
  %v37 = vld [vmem:[%s1 + $0xa8] sm:$0xff]
  %v38 = vld [vmem:[%s1 + $0xb0] sm:$0xff]
  %v39 = vld [vmem:[%s1 + $0xb8] sm:$0xff]
  %v40 = vld [vmem:[%s1 + $0xc0] sm:$0xff]
  %v41 = vld [vmem:[%s1 + $0xc8] sm:$0xff]
  %v42 = vld [vmem:[%s1 + $0xd0] sm:$0xff]
  %v43 = vld [vmem:[%s1 + $0xd8] sm:$0xff]
  %v44 = vld [vmem:[%s1 + $0xe0] sm:$0xff]
  %v45 = vld [vmem:[%s1 + $0xe8] sm:$0xff]
  %v46 = vld [vmem:[%s1 + $0xf0] sm:$0xff]
  %v47 = vld [vmem:[%s1 + $0xf8] sm:$0xff]
  %v48 = vld [vmem:[%s2] sm:$0xff]
  %v49 = vld [vmem:[%s2 + $0x8] sm:$0xff]
  %v50 = vld [vmem:[%s2 + $0x10] sm:$0xff]
  %v51 = vld [vmem:[%s2 + $0x18] sm:$0xff]
  %v52 = vld [vmem:[%s2 + $0x20] sm:$0xff]
  %v53 = vld [vmem:[%s2 + $0x28] sm:$0xff]
  %v54 = vld [vmem:[%s2 + $0x30] sm:$0xff]
  %v55 = vld [vmem:[%s2 + $0x38] sm:$0xff]
  %v56 = vld [vmem:[%s2 + $0x40] sm:$0xff]
  %v57 = vld [vmem:[%s2 + $0x48] sm:$0xff]
  %v58 = vld [vmem:[%s2 + $0x50] sm:$0xff]
  %v59 = vld [vmem:[%s2 + $0x58] sm:$0xff]
  %v60 = vld [vmem:[%s2 + $0x60] sm:$0xff]
  %v61 = vld [vmem:[%s2 + $0x68] sm:$0xff]
  %v62 = vld [vmem:[%s2 + $0x70] sm:$0xff]
  %v63 = vld [vmem:[%s2 + $0x78] sm:$0xff]
  %v64 = vld [vmem:[%s2 + $0x80] sm:$0xff]
  %v65 = vld [vmem:[%s2 + $0x88] sm:$0xff]
  %v66 = vld [vmem:[%s2 + $0x90] sm:$0xff]
  %v67 = vld [vmem:[%s2 + $0x98] sm:$0xff]
  %v68 = vld [vmem:[%s2 + $0xa0] sm:$0xff]
  %v69 = vld [vmem:[%s2 + $0xa8] sm:$0xff]
  %v70 = vld [vmem:[%s2 + $0xb0] sm:$0xff]
  %v71 = vld [vmem:[%s2 + $0xb8] sm:$0xff]
  %v72 = vld [vmem:[%s2 + $0xc0] sm:$0xff]
  %v73 = vld [vmem:[%s2 + $0xc8] sm:$0xff]
  %v74 = vld [vmem:[%s2 + $0xd0] sm:$0xff]
  %v75 = vld [vmem:[%s2 + $0xd8] sm:$0xff]
  %v76 = vld [vmem:[%s2 + $0xe0] sm:$0xff]
  %v77 = vld [vmem:[%s2 + $0xe8] sm:$0xff]
  %v78 = vld [vmem:[%s2 + $0xf0] sm:$0xff]
  %v79 = vld [vmem:[%s2 + $0xf8] sm:$0xff]
  %v80 = vstv %s15
  %v81 = vmul.f32 %v80, %v16
  %v82 = vmul.f32 %v80, %v17
  %v83 = vmul.f32 %v80, %v18
  %v84 = vmul.f32 %v80, %v19
  %v85 = vmul.f32 %v80, %v20
  %v86 = vmul.f32 %v80, %v21
  %v87 = vmul.f32 %v80, %v22
  %v88 = vmul.f32 %v80, %v23
  %v89 = vmul.f32 %v80, %v24
  %v90 = vmul.f32 %v80, %v25
  %v91 = vmul.f32 %v80, %v26
  %v92 = vmul.f32 %v80, %v27
  %v93 = vmul.f32 %v80, %v28
  %v94 = vmul.f32 %v80, %v29
  %v95 = vmul.f32 %v80, %v30
  %v96 = vmul.f32 %v80, %v31
  %v97 = vmul.f32 %v80, %v32
  %v98 = vmul.f32 %v80, %v33
  %v99 = vmul.f32 %v80, %v34
  %v100 = vmul.f32 %v80, %v35
  %v101 = vmul.f32 %v80, %v36
  %v102 = vmul.f32 %v80, %v37
  %v103 = vmul.f32 %v80, %v38
  %v104 = vmul.f32 %v80, %v39
  %v105 = vmul.f32 %v80, %v40
  %v106 = vmul.f32 %v80, %v41
  %v107 = vmul.f32 %v80, %v42
  %v108 = vmul.f32 %v80, %v43
  %v109 = vmul.f32 %v80, %v44
  %v110 = vmul.f32 %v80, %v45
  %v111 = vmul.f32 %v80, %v46
  %v112 = vmul.f32 %v80, %v47
  %s113 = ssub.f32 1.0, %s15
  %v114 = vstv %s113
  %v115 = vmul.f32 %v114, %v48
  %v116 = vmul.f32 %v114, %v49
  %v117 = vmul.f32 %v114, %v50
  %v118 = vmul.f32 %v114, %v51
  %v119 = vmul.f32 %v114, %v52
  %v120 = vmul.f32 %v114, %v53
  %v121 = vmul.f32 %v114, %v54
  %v122 = vmul.f32 %v114, %v55
  %v123 = vmul.f32 %v114, %v56
  %v124 = vmul.f32 %v114, %v57
  %v125 = vmul.f32 %v114, %v58
  %v126 = vmul.f32 %v114, %v59
  %v127 = vmul.f32 %v114, %v60
  %v128 = vmul.f32 %v114, %v61
  %v129 = vmul.f32 %v114, %v62
  %v130 = vmul.f32 %v114, %v63
  %v131 = vmul.f32 %v114, %v64
  %v132 = vmul.f32 %v114, %v65
  %v133 = vmul.f32 %v114, %v66
  %v134 = vmul.f32 %v114, %v67
  %v135 = vmul.f32 %v114, %v68
  %v136 = vmul.f32 %v114, %v69
  %v137 = vmul.f32 %v114, %v70
  %v138 = vmul.f32 %v114, %v71
  %v139 = vmul.f32 %v114, %v72
  %v140 = vmul.f32 %v114, %v73
  %v141 = vmul.f32 %v114, %v74
  %v142 = vmul.f32 %v114, %v75
  %v143 = vmul.f32 %v114, %v76
  %v144 = vmul.f32 %v114, %v77
  %v145 = vmul.f32 %v114, %v78
  %v146 = vmul.f32 %v114, %v79
  %v147 = vadd.f32 %v81, %v115
  %v148 = vadd.f32 %v82, %v116
  %v149 = vadd.f32 %v83, %v117
  %v150 = vadd.f32 %v84, %v118
  %v151 = vadd.f32 %v85, %v119
  %v152 = vadd.f32 %v86, %v120
  %v153 = vadd.f32 %v87, %v121
  %v154 = vadd.f32 %v88, %v122
  %v155 = vadd.f32 %v89, %v123
  %v156 = vadd.f32 %v90, %v124
  %v157 = vadd.f32 %v91, %v125
  %v158 = vadd.f32 %v92, %v126
  %v159 = vadd.f32 %v93, %v127
  %v160 = vadd.f32 %v94, %v128
  %v161 = vadd.f32 %v95, %v129
  %v162 = vadd.f32 %v96, %v130
  %v163 = vadd.f32 %v97, %v131
  %v164 = vadd.f32 %v98, %v132
  %v165 = vadd.f32 %v99, %v133
  %v166 = vadd.f32 %v100, %v134
  %v167 = vadd.f32 %v101, %v135
  %v168 = vadd.f32 %v102, %v136
  %v169 = vadd.f32 %v103, %v137
  %v170 = vadd.f32 %v104, %v138
  %v171 = vadd.f32 %v105, %v139
  %v172 = vadd.f32 %v106, %v140
  %v173 = vadd.f32 %v107, %v141
  %v174 = vadd.f32 %v108, %v142
  %v175 = vadd.f32 %v109, %v143
  %v176 = vadd.f32 %v110, %v144
  %v177 = vadd.f32 %v111, %v145
  %v178 = vadd.f32 %v112, %v146
  %179 = vst [vmem:[%s3] sm:$0xff] %v147
  %180 = vst [vmem:[%s3 + $0x8] sm:$0xff] %v148
  %181 = vst [vmem:[%s3 + $0x10] sm:$0xff] %v149
  %182 = vst [vmem:[%s3 + $0x18] sm:$0xff] %v150
  %183 = vst [vmem:[%s3 + $0x20] sm:$0xff] %v151
  %184 = vst [vmem:[%s3 + $0x28] sm:$0xff] %v152
  %185 = vst [vmem:[%s3 + $0x30] sm:$0xff] %v153
  %186 = vst [vmem:[%s3 + $0x38] sm:$0xff] %v154
  %187 = vst [vmem:[%s3 + $0x40] sm:$0xff] %v155
  %188 = vst [vmem:[%s3 + $0x48] sm:$0xff] %v156
  %189 = vst [vmem:[%s3 + $0x50] sm:$0xff] %v157
  %190 = vst [vmem:[%s3 + $0x58] sm:$0xff] %v158
  %191 = vst [vmem:[%s3 + $0x60] sm:$0xff] %v159
  %192 = vst [vmem:[%s3 + $0x68] sm:$0xff] %v160
  %193 = vst [vmem:[%s3 + $0x70] sm:$0xff] %v161
  %194 = vst [vmem:[%s3 + $0x78] sm:$0xff] %v162
  %195 = vst [vmem:[%s3 + $0x80] sm:$0xff] %v163
  %196 = vst [vmem:[%s3 + $0x88] sm:$0xff] %v164
  %197 = vst [vmem:[%s3 + $0x90] sm:$0xff] %v165
  %198 = vst [vmem:[%s3 + $0x98] sm:$0xff] %v166
  %199 = vst [vmem:[%s3 + $0xa0] sm:$0xff] %v167
  %200 = vst [vmem:[%s3 + $0xa8] sm:$0xff] %v168
  %201 = vst [vmem:[%s3 + $0xb0] sm:$0xff] %v169
  %202 = vst [vmem:[%s3 + $0xb8] sm:$0xff] %v170
  %203 = vst [vmem:[%s3 + $0xc0] sm:$0xff] %v171
  %204 = vst [vmem:[%s3 + $0xc8] sm:$0xff] %v172
  %205 = vst [vmem:[%s3 + $0xd0] sm:$0xff] %v173
  %206 = vst [vmem:[%s3 + $0xd8] sm:$0xff] %v174
  %207 = vst [vmem:[%s3 + $0xe0] sm:$0xff] %v175
  %208 = vst [vmem:[%s3 + $0xe8] sm:$0xff] %v176
  %209 = vst [vmem:[%s3 + $0xf0] sm:$0xff] %v177
  %210 = vst [vmem:[%s3 + $0xf8] sm:$0xff] %v178
  // Predicated region
  $region14: #{_ema_update_jit.9} parent=0 // pred_check
    _
  $region15: #{_ema_update_jit.9} parent=0 // pred_check_branch
    %212 = sbr.rel (0) target = $region17
  $region16: #{_ema_update_jit.9} parent=0 // pred_region
    _
  $region17: #{_ema_update_jit.9} parent=0 // pred_fallthru
    _
  // Predicated region
  $region18: #{_ema_update_jit.9} parent=0 // pred_check
    _
  $region19: #{_ema_update_jit.9} parent=0 // pred_check_branch
    %214 = sbr.rel (0) target = $region21
  $region20: #{_ema_update_jit.9} parent=0 // pred_region
    _
  $region21: #{_ema_update_jit.9} parent=0 // pred_fallthru
    _

</llo_original>
